<compile_context>
chip_gen: v7x
topology: tpu7x:2x2x1
jax: 0.10.0
libtpu: 0.0.40
codegen_flags: <defaults>
</compile_context>

<pallas_src>
import functools

import jax
import jax.numpy as jnp
from jax import lax
from jax.experimental import pallas as pl
from jax.experimental.pallas import tpu as pltpu

_LANES = 128


# --------------------------------------------------------------------------
# Kernels
# --------------------------------------------------------------------------
def _bn_fused_kernel(x_ref, w_ref, b_ref, o_ref, mean_ref, var_ref,
                     *, count, eps, compute_dtype):
    """Single-pass path: whole (N, C, HW) activation resident in VMEM.

    Stats are accumulated with a fori_loop over N (slab-sized temporaries
    only), then the folded affine is applied in place.  x is read from HBM
    exactly once and out written once.
    """
    n, c, hw = x_ref.shape

    def stat_body(i, carry):
        s, q = carry
        row = x_ref[i].astype(jnp.float32)           # (C, HW)
        return s + row, q + row * row

    zeros = jnp.zeros((c, hw), jnp.float32)
    s, q = lax.fori_loop(0, n, stat_body, (zeros, zeros))

    inv_n = jnp.float32(1.0 / count)
    total = jnp.sum(s, axis=1, keepdims=True)        # (C, 1)
    total_sq = jnp.sum(q, axis=1, keepdims=True)     # (C, 1)
    mean = total * inv_n
    # Single-pass biased variance (E[x^2] - mean^2), accumulated in f32.
    # TODO(synk): switch to a shifted-sum / Welford merge if |mean| >> std
    # regimes need exact parity with the centered-variance reference.
    var = jnp.maximum(total_sq * inv_n - mean * mean, 0.0)
    inv_std = lax.rsqrt(var + jnp.float32(eps))      # O(C) EUP work
    scale = w_ref[...].astype(jnp.float32) * inv_std
    shift = b_ref[...].astype(jnp.float32) - mean * scale
    mean_ref[...] = mean
    var_ref[...] = var

    scale_c = scale.astype(compute_dtype)
    shift_c = shift.astype(compute_dtype)

    def apply_body(i, carry):
        xi = x_ref[i].astype(compute_dtype)          # (C, HW)
        o_ref[i] = (xi * scale_c + shift_c).astype(o_ref.dtype)
        return carry

    lax.fori_loop(0, n, apply_body, 0)


def _bn_reduce_kernel(x_ref, w_ref, b_ref,
                      mean_ref, var_ref, scale_ref, shift_ref,
                      sum_acc, sq_acc, *, count, eps):
    """Phase 1 (tiled path): accumulate per-channel sum / sum-of-squares.

    x_ref:            (n_blk, c_tile, hw_tile) input tile
    w_ref / b_ref:    (c_tile, 1) gamma / beta
    mean/var/scale/shift_ref: (c_tile, 1) outputs, written once at the last step
    sum_acc / sq_acc: (c_tile, 128) f32 column accumulators (VMEM scratch)
    """
    ni = pl.program_id(1)
    hi = pl.program_id(2)
    is_first = jnp.logical_and(ni == 0, hi == 0)
    is_last = jnp.logical_and(ni == pl.num_programs(1) - 1,
                              hi == pl.num_programs(2) - 1)

    @pl.when(is_first)
    def _():
        sum_acc[...] = jnp.zeros_like(sum_acc)
        sq_acc[...] = jnp.zeros_like(sq_acc)

    n_blk, c_tile, hw_tile = x_ref.shape

    if hw_tile % _LANES == 0:
        # Vreg-resident accumulation: stream 128-lane chunks of the block
        # directly into the (c_tile, 128) accumulators.  No (c_tile, hw_tile)
        # temporaries -> load/store slots stay free for the HBM stream.
        nchunks = hw_tile // _LANES

        def body(idx, carry):
            s, q = carry
            nn = idx // nchunks
            k = idx - nn * nchunks
            off = pl.multiple_of(k * _LANES, _LANES)
            chunk = x_ref[nn, :, pl.ds(off, _LANES)].astype(jnp.float32)
            return s + chunk, q + chunk * chunk

        s, q = lax.fori_loop(0, n_blk * nchunks, body,
                             (sum_acc[...], sq_acc[...]))
        sum_acc[...] = s
        sq_acc[...] = q
    else:
        # Ragged HW fallback (full-HW block, HW not lane-aligned): one
        # cross-lane reduce per batch row, accumulated into lane 0.
        # TODO(synk): repack small-HW layers into a lane-dense layout
        # (fold N into lanes) instead of masked partial-lane tiles.
        def body(nn, carry):
            s0, q0 = carry
            row = x_ref[nn].astype(jnp.float32)      # (c_tile, hw_tile)
            return (s0 + jnp.sum(row, axis=1, keepdims=True),
                    q0 + jnp.sum(row * row, axis=1, keepdims=True))

        s0, q0 = lax.fori_loop(0, n_blk, body,
                               (sum_acc[:, 0:1], sq_acc[:, 0:1]))
        sum_acc[:, 0:1] = s0
        sq_acc[:, 0:1] = q0

    @pl.when(is_last)
    def _():
        inv_n = jnp.float32(1.0 / count)
        total = jnp.sum(sum_acc[...], axis=1, keepdims=True)     # (c_tile, 1)
        total_sq = jnp.sum(sq_acc[...], axis=1, keepdims=True)   # (c_tile, 1)
        mean = total * inv_n
        # TODO(synk): shifted-sum / Welford merge for |mean| >> std regimes.
        var = jnp.maximum(total_sq * inv_n - mean * mean, 0.0)
        inv_std = lax.rsqrt(var + jnp.float32(eps))              # O(C) EUP work
        scale = w_ref[...].astype(jnp.float32) * inv_std
        shift = b_ref[...].astype(jnp.float32) - mean * scale
        mean_ref[...] = mean
        var_ref[...] = var
        scale_ref[...] = scale
        shift_ref[...] = shift


def _bn_apply_kernel(x_ref, scale_ref, shift_ref, o_ref, *, compute_dtype):
    """Phase 2 (tiled path): out = x * scale + shift (one FMA per element)."""
    x = x_ref[...].astype(compute_dtype)             # (n_blk, c_tile, hw_tile)
    scale = scale_ref[...].astype(compute_dtype)     # (c_tile, 1) broadcast
    shift = shift_ref[...].astype(compute_dtype)
    o_ref[...] = (x * scale + shift).astype(o_ref.dtype)


# --------------------------------------------------------------------------
# Wrapper / tiling
# --------------------------------------------------------------------------
def _pick_tile(total, quantum, max_tile):
    """Largest divisor of `total` that is a multiple of `quantum` and <=
    max_tile; falls back to `total` (full dim is always legal)."""
    if total <= max_tile:
        return total
    t = (max_tile // quantum) * quantum
    while t >= quantum:
        if total % t == 0:
            return t
        t -= quantum
    return total


def _vmem_capacity_bytes():
    """Per-TensorCore VMEM capacity; conservative (v7x-sized) fallback."""
    try:
        cap = int(pltpu.get_tpu_info().vmem_capacity_bytes)
        if cap > 0:
            return cap
    except Exception:
        pass
    return 64 * 1024 * 1024


def batch_norm_forward(x, weight, bias, *, eps=1e-5, force_two_phase=False):
    """Training-mode batch norm forward.

    x:      (N, C, H, W)
    weight: (C,) gamma
    bias:   (C,) beta
    Returns (out NCHW, mean (C,), biased var (C,))
    """
    n, c, h, w = x.shape
    hw = h * w
    count = n * hw

    # Free, contiguous reshapes only — no transposes, no extra HBM traffic.
    x3 = x.reshape(n, c, hw)
    w2 = weight.reshape(c, 1).astype(jnp.float32)
    b2 = bias.reshape(c, 1).astype(jnp.float32)

    itemsize = jnp.dtype(x.dtype).itemsize
    compute_dtype = jnp.bfloat16 if x.dtype == jnp.bfloat16 else jnp.float32

    cap = _vmem_capacity_bytes()

    # ---- Fused single-pass fast path: whole activation resident in VMEM.
    fused_limit = cap - cap // 8                      # ~112 MiB v5e/v6e, ~56 MiB v7x
    fused_need = (2 * n * c * hw * itemsize           # x + out VMEM buffers
                  + 8 * c * hw * 4                    # slab accumulators / temps
                  + (2 << 20))                        # slack
    if (not force_two_phase) and fused_need <= fused_limit:
        fused = functools.partial(_bn_fused_kernel, count=count, eps=eps,
                                  compute_dtype=compute_dtype)
        out3, mean2, var2 = pl.pallas_call(
            fused,
            out_shape=(
                jax.ShapeDtypeStruct((n, c, hw), x.dtype),
                jax.ShapeDtypeStruct((c, 1), jnp.float32),
                jax.ShapeDtypeStruct((c, 1), jnp.float32),
            ),
            compiler_params=pltpu.CompilerParams(
                vmem_limit_bytes=int(fused_limit)),
        )(x3, w2, b2)
        return out3.reshape(n, c, h, w), mean2.reshape(c), var2.reshape(c)

    # ---- Two-phase tiled path (generation-aware block sizing).
    vmem_limit = int(min(cap * 3 // 4, 112 * 1024 * 1024))
    block_budget = vmem_limit // 5    # apply phase: 2x in + 2x out buffers + slack

    # dtype-dependent sublane quantum: 8 f32 / 16 bf16 / 32 int8-fp8.
    quantum = 8 if itemsize >= 4 else (16 if itemsize == 2 else 32)
    c_tile = _pick_tile(c, quantum, max(32, quantum))
    # Megacore coverage: prefer >=2 channel tiles so v7x can shard phase 1
    # across its two TensorCores (harmless on single-TC chips).
    if c // c_tile < 2 and c_tile % (2 * quantum) == 0:
        c_tile //= 2
    # TODO(synk): for C too small to split, per-core partial-sum outputs over
    # the N axis would be needed for full v7x megacore coverage of phase 1.

    hw_cap = max(_LANES, min(16384, block_budget // max(1, c_tile * itemsize)))
    hw_tile = _pick_tile(hw, _LANES, hw_cap)

    per_n_bytes = c_tile * hw_tile * itemsize
    n_cap = max(1, block_budget // per_n_bytes)
    n_blk = 1
    for d in range(1, n + 1):
        if n % d == 0 and d <= n_cap:
            n_blk = d

    grid = (c // c_tile, n // n_blk, hw // hw_tile)

    x_spec = pl.BlockSpec((n_blk, c_tile, hw_tile),
                          lambda ci, ni, hi: (ni, ci, hi))
    vec_spec = pl.BlockSpec((c_tile, 1), lambda ci, ni, hi: (ci, 0))

    reduce_kernel = functools.partial(_bn_reduce_kernel, count=count, eps=eps)
    mean2, var2, scale2, shift2 = pl.pallas_call(
        reduce_kernel,
        out_shape=(
            jax.ShapeDtypeStruct((c, 1), jnp.float32),
            jax.ShapeDtypeStruct((c, 1), jnp.float32),
            jax.ShapeDtypeStruct((c, 1), jnp.float32),
            jax.ShapeDtypeStruct((c, 1), jnp.float32),
        ),
        grid_spec=pltpu.PrefetchScalarGridSpec(
            num_scalar_prefetch=0,
            grid=grid,
            in_specs=[x_spec, vec_spec, vec_spec],
            out_specs=[vec_spec, vec_spec, vec_spec, vec_spec],
            scratch_shapes=[
                pltpu.VMEM((c_tile, _LANES), jnp.float32),
                pltpu.VMEM((c_tile, _LANES), jnp.float32),
            ],
        ),
        compiler_params=pltpu.CompilerParams(
            dimension_semantics=("parallel", "arbitrary", "arbitrary"),
            vmem_limit_bytes=vmem_limit,
        ),
    )(x3, w2, b2)

    apply_kernel = functools.partial(_bn_apply_kernel,
                                     compute_dtype=compute_dtype)
    out3 = pl.pallas_call(
        apply_kernel,
        out_shape=jax.ShapeDtypeStruct((n, c, hw), x.dtype),
        grid_spec=pltpu.PrefetchScalarGridSpec(
            num_scalar_prefetch=0,
            grid=grid,
            in_specs=[x_spec, vec_spec, vec_spec],
            out_specs=x_spec,
        ),
        compiler_params=pltpu.CompilerParams(
            dimension_semantics=("parallel", "parallel", "parallel"),
            vmem_limit_bytes=vmem_limit,
        ),
    )(x3, scale2, shift2)

    out = out3.reshape(n, c, h, w)
    return out, mean2.reshape(c), var2.reshape(c)


# --------------------------------------------------------------------------
# Module wrapper mirroring the PyTorch forward
# --------------------------------------------------------------------------
class BatchNormalizationPallas:
    """Mirrors the PyTorch module's forward (training mode) using Pallas kernels."""

    def __init__(self, num_features, epsilon=1e-5, momentum=0.9, affine=True):
        self.num_features = num_features
        self.epsilon = epsilon
        self.momentum = momentum
        self.affine = affine
        # Deterministic init matching the module: weight=ones, bias=zeros.
        self.weight = jnp.ones((num_features,), dtype=jnp.float32)
        self.bias = jnp.zeros((num_features,), dtype=jnp.float32)
        self.running_mean = None
        self.running_var = None
        self.is_training = True

    def __call__(self, x):
        n, c, h, w = x.shape
        if self.running_mean is None:
            # Mirrors the custom module (zeros init, not nn.BatchNorm2d's ones).
            self.running_mean = jnp.zeros((c,), dtype=jnp.float32)
            self.running_var = jnp.zeros((c,), dtype=jnp.float32)
        if self.is_training:
            out, mean, var = batch_norm_forward(
                x, self.weight, self.bias, eps=self.epsilon
            )
            # Module's convention: new = momentum*old + (1-momentum)*batch,
            # with biased variance (intentionally not nn.BatchNorm2d semantics).
            self.running_mean = (
                self.momentum * self.running_mean + (1.0 - self.momentum) * mean
            )
            self.running_var = (
                self.momentum * self.running_var + (1.0 - self.momentum) * var
            )
            return out
        else:
            # TODO(synk): inference path (running-stat normalization) is plain
            # JAX glue; the hot training path is implemented in the kernels.
            mean = self.running_mean.reshape(1, -1, 1, 1)
            var = self.running_var.reshape(1, -1, 1, 1)
            x_norm = (x - mean) / jnp.sqrt(var + self.epsilon)
            return self.weight.reshape(1, -1, 1, 1) * x_norm + self.bias.reshape(
                1, -1, 1, 1
            )


if __name__ == "__main__":
    key = jax.random.PRNGKey(0)
    N, C, H, W = 2, 4, 16, 16
    x = jax.random.normal(key, (N, C, H, W), dtype=jnp.float32) * 2.0 + 0.5

    bn = BatchNormalizationPallas(num_features=C, epsilon=1e-5, momentum=0.9)
    out = bn(x)
    out = jax.block_until_ready(out)

    # Pure-JAX reference check of the forward semantics (fused path).
    mean_ref = jnp.mean(x, axis=(0, 2, 3), keepdims=True)
    var_ref = jnp.mean((x - mean_ref) ** 2, axis=(0, 2, 3), keepdims=True)
    ref = (x - mean_ref) / jnp.sqrt(var_ref + 1e-5)
    ref = bn.weight.reshape(1, -1, 1, 1) * ref + bn.bias.reshape(1, -1, 1, 1)

    assert out.shape == (N, C, H, W)
    assert jnp.max(jnp.abs(out - ref)) < 1e-4
    assert jnp.max(jnp.abs(bn.running_mean * 10.0 - mean_ref.reshape(-1))) < 1e-4
    assert jnp.max(jnp.abs(bn.running_var * 10.0 - var_ref.reshape(-1))) < 1e-4

    # Also exercise the tiled two-phase path (forced) on a modest shape.
    key2 = jax.random.PRNGKey(1)
    N2, C2, H2, W2 = 4, 32, 32, 32
    x2 = jax.random.normal(key2, (N2, C2, H2, W2), dtype=jnp.float32) * 1.5 - 0.25
    g2 = jnp.linspace(0.5, 1.5, C2, dtype=jnp.float32)
    be2 = jnp.linspace(-0.2, 0.3, C2, dtype=jnp.float32)
    out2, mean2, var2 = batch_norm_forward(x2, g2, be2, eps=1e-5,
                                           force_two_phase=True)
    out2 = jax.block_until_ready(out2)
    m_ref2 = jnp.mean(x2, axis=(0, 2, 3))
    v_ref2 = jnp.mean((x2 - m_ref2.reshape(1, -1, 1, 1)) ** 2, axis=(0, 2, 3))
    ref2 = (x2 - m_ref2.reshape(1, -1, 1, 1)) / jnp.sqrt(
        v_ref2.reshape(1, -1, 1, 1) + 1e-5)
    ref2 = g2.reshape(1, -1, 1, 1) * ref2 + be2.reshape(1, -1, 1, 1)
    assert jnp.max(jnp.abs(mean2 - m_ref2)) < 1e-4
    assert jnp.max(jnp.abs(var2 - v_ref2)) < 2e-4
    assert jnp.max(jnp.abs(out2 - ref2)) < 2e-4

    print("KERNEL_OK")
</pallas_src>

<mosaic_0001>
module attributes {stable_mosaic.version = 11 : i64} {
  func.func @_bn_fused_kernel(%arg0: memref<2x4x256xf32, #tpu.memory_space<vmem>>, %arg1: memref<4x1xf32, #tpu.memory_space<vmem>>, %arg2: memref<4x1xf32, #tpu.memory_space<vmem>>, %arg3: memref<2x4x256xf32, #tpu.memory_space<vmem>>, %arg4: memref<4x1xf32, #tpu.memory_space<vmem>>, %arg5: memref<4x1xf32, #tpu.memory_space<vmem>>) attributes {dimension_semantics = [], scalar_prefetch = 0 : i64, scratch_operands = 0 : i64, tpu.core_type = #tpu.core_type<tc>} {
    %cst = arith.constant 0.000000e+00 : f32
    %0 = vector.broadcast %cst : f32 to vector<4x256xf32>
    %c0_i32 = arith.constant 0 : i32
    %c2_i32 = arith.constant 2 : i32
    %1 = arith.addi %c0_i32, %c2_i32 : i32
    %c1_i32 = arith.constant 1 : i32
    %2:2 = scf.for %arg6 = %c0_i32 to %1 step %c1_i32 iter_args(%arg7 = %0, %arg8 = %0) -> (vector<4x256xf32>, vector<4x256xf32>)  : i32 {
      %26 = arith.index_cast %arg6 : i32 to index
      %c0_18 = arith.constant 0 : index
      %c0_19 = arith.constant 0 : index
      %27 = vector.load %arg0[%26, %c0_18, %c0_19] : memref<2x4x256xf32, #tpu.memory_space<vmem>>, vector<1x4x256xf32>
      %28 = vector.shape_cast %27 : vector<1x4x256xf32> to vector<4x256xf32>
      %29 = arith.addf %arg7, %28 : vector<4x256xf32>
      %30 = arith.mulf %28, %28 : vector<4x256xf32>
      %31 = arith.addf %arg8, %30 : vector<4x256xf32>
      scf.yield %29, %31 : vector<4x256xf32>, vector<4x256xf32>
    }
    %c2_i32_0 = arith.constant 2 : i32
    %cst_1 = arith.constant dense<0.000000e+00> : vector<4xf32>
    %3 = vector.multi_reduction <add>, %2#0, %cst_1 [1] : vector<4x256xf32> to vector<4xf32>
    %4 = vector.shape_cast %3 : vector<4xf32> to vector<4x1xf32>
    %cst_2 = arith.constant dense<0.000000e+00> : vector<4xf32>
    %5 = vector.multi_reduction <add>, %2#1, %cst_2 [1] : vector<4x256xf32> to vector<4xf32>
    %6 = vector.shape_cast %5 : vector<4xf32> to vector<4x1xf32>
    %cst_3 = arith.constant 0.001953125 : f32
    %7 = vector.broadcast %cst_3 : f32 to vector<4x1xf32>
    %8 = arith.mulf %4, %7 : vector<4x1xf32>
    %cst_4 = arith.constant 0.001953125 : f32
    %9 = vector.broadcast %cst_4 : f32 to vector<4x1xf32>
    %10 = arith.mulf %6, %9 : vector<4x1xf32>
    %11 = arith.mulf %8, %8 : vector<4x1xf32>
    %12 = arith.subf %10, %11 : vector<4x1xf32>
    %cst_5 = arith.constant 0.000000e+00 : f32
    %13 = vector.broadcast %cst_5 : f32 to vector<4x1xf32>
    %14 = arith.maximumf %12, %13 : vector<4x1xf32>
    %cst_6 = arith.constant 9.99999974E-6 : f32
    %15 = vector.broadcast %cst_6 : f32 to vector<4x1xf32>
    %16 = arith.addf %14, %15 : vector<4x1xf32>
    %17 = math.rsqrt %16 : vector<4x1xf32>
    %c0 = arith.constant 0 : index
    %c0_7 = arith.constant 0 : index
    %18 = vector.load %arg1[%c0, %c0_7] : memref<4x1xf32, #tpu.memory_space<vmem>>, vector<4x1xf32>
    %19 = arith.mulf %18, %17 : vector<4x1xf32>
    %c0_8 = arith.constant 0 : index
    %c0_9 = arith.constant 0 : index
    %20 = vector.load %arg2[%c0_8, %c0_9] : memref<4x1xf32, #tpu.memory_space<vmem>>, vector<4x1xf32>
    %21 = arith.mulf %8, %19 : vector<4x1xf32>
    %22 = arith.subf %20, %21 : vector<4x1xf32>
    %c0_10 = arith.constant 0 : index
    %c0_11 = arith.constant 0 : index
    %23 = vector.load %arg4[%c0_10, %c0_11] : memref<4x1xf32, #tpu.memory_space<vmem>>, vector<4x1xf32>
    tpu.vector_store %arg4[%c0_10, %c0_11], %8 {strides = array<i32>} : memref<4x1xf32, #tpu.memory_space<vmem>>, vector<4x1xf32>,
    %c0_12 = arith.constant 0 : index
    %c0_13 = arith.constant 0 : index
    %24 = vector.load %arg5[%c0_12, %c0_13] : memref<4x1xf32, #tpu.memory_space<vmem>>, vector<4x1xf32>
    tpu.vector_store %arg5[%c0_12, %c0_13], %14 {strides = array<i32>} : memref<4x1xf32, #tpu.memory_space<vmem>>, vector<4x1xf32>,
    %c0_i32_14 = arith.constant 0 : i32
    %c2_i32_15 = arith.constant 2 : i32
    %25 = arith.addi %c0_i32_14, %c2_i32_15 : i32
    %c1_i32_16 = arith.constant 1 : i32
    scf.for %arg6 = %c0_i32_14 to %25 step %c1_i32_16  : i32 {
      %26 = arith.index_cast %arg6 : i32 to index
      %c0_18 = arith.constant 0 : index
      %c0_19 = arith.constant 0 : index
      %27 = vector.load %arg0[%26, %c0_18, %c0_19] : memref<2x4x256xf32, #tpu.memory_space<vmem>>, vector<1x4x256xf32>
      %28 = vector.shape_cast %27 : vector<1x4x256xf32> to vector<4x256xf32>
      %29 = vector.broadcast %19 : vector<4x1xf32> to vector<4x256xf32>
      %30 = arith.mulf %28, %29 : vector<4x256xf32>
      %31 = vector.broadcast %22 : vector<4x1xf32> to vector<4x256xf32>
      %32 = arith.addf %30, %31 : vector<4x256xf32>
      %33 = arith.index_cast %arg6 : i32 to index
      %c0_20 = arith.constant 0 : index
      %c0_21 = arith.constant 0 : index
      %34 = vector.load %arg3[%33, %c0_20, %c0_21] : memref<2x4x256xf32, #tpu.memory_space<vmem>>, vector<1x4x256xf32>
      %35 = vector.shape_cast %34 : vector<1x4x256xf32> to vector<4x256xf32>
      %36 = vector.shape_cast %32 : vector<4x256xf32> to vector<1x4x256xf32>
      tpu.vector_store %arg3[%33, %c0_20, %c0_21], %36 {strides = array<i32>} : memref<2x4x256xf32, #tpu.memory_space<vmem>>, vector<1x4x256xf32>,
    }
    %c2_i32_17 = arith.constant 2 : i32
    return
  }
}

</mosaic_0001>

<llo_original>
// kernel: tpu_custom_call.1
$region0: #{tpu_custom_call.1}
  #allocation0 [shape = 'u32[]', space=smem, size = 0x4, offset = 0x4, fixed_abs, tag = 'smem constant byte address 0x4 - core index']
  #allocation1 [shape = 'u32[144,128]{1,0:T(1,128)}', space=vmem, size = 0x12000, scoped, tag = 'internal scratch']
  %s0 = inlined_call_operand.hbm [shape: f32[2,4,256], index: 0, kind: input, shape index: {}]
  %s1 = inlined_call_operand.vmem [shape: f32[4,1], index: 1, kind: input, shape index: {}]
  %s2 = inlined_call_operand.vmem [shape: f32[4,1], index: 2, kind: input, shape index: {}]
  %s3 = inlined_call_operand.hbm [shape: f32[2,4,256], index: 3, kind: output, shape index: {0}]
  %s4 = inlined_call_operand.vmem [shape: f32[4,1], index: 4, kind: output, shape index: {1}]
  %s5 = inlined_call_operand.vmem [shape: f32[4,1], index: 5, kind: output, shape index: {2}]
  %6 = xla_tuple %s3, %s4, %s5
  %s7 = sld [smem:[#allocation0]]
  $region56: #{tpu_custom_call.1} parent=0
    _
  %s9 = ssub.s32 1, %s7
  %s10 = scalar_select 0, %s9, %s7
  $region1: #{tpu_custom_call.1} parent=0
    #allocation2 [shape = 'u8[8192]{0}', space=vmem, size = 0x2000, scoped, tag = 'input window, operand 0, single buffered']
    #allocation3 [shape = 's32[1]{0}', space=sflag, size = 0x4, scoped, tag = 'scoped memory for tpu_custom_call.1']
    #allocation4 [shape = 's32[1]{0}', space=sflag, size = 0x4, scoped, tag = 'scoped memory for tpu_custom_call.1']
    #allocation5 [shape = 'u8[8192]{0}', space=vmem, size = 0x2000, scoped, tag = 'output window, operand 0, single buffered']
    %11 = vsyncpa [#allocation3], 0
    %12 = vsyncpa [#allocation4], 0
    // Predicated region
    $region2: #{tpu_custom_call.1} parent=1 // pred_check
      _
    $region3: #{tpu_custom_call.1} parent=1 // pred_check_branch
      %14 = sbr.rel (0) target = $region5
    $region4: #{tpu_custom_call.1} parent=1 // pred_region
      %s16 = ssub.s32 256, 256
      %17 = vsyncadd [#allocation3], %s16
      %s18 = sshll.u32 [#allocation2], 4
      %s19 = int_to_ptr.vmem [resolvable:$true] %s18
      %24 = dma.hbm_to_vmem [thread:$0]  %s0, 256, %s19, [#allocation3], 128, 128, 8
    $region5: #{tpu_custom_call.1} parent=1 // pred_fallthru
      _
    // Predicated region
    $region6: #{tpu_custom_call.1} parent=1 // pred_check
      _
    $region7: #{tpu_custom_call.1} parent=1 // pred_check_branch
      %26 = sbr.rel (0) target = $region9
    $region8: #{tpu_custom_call.1} parent=1 // pred_region
      _
    $region9: #{tpu_custom_call.1} parent=1 // pred_fallthru
      _
    // Predicated region
    $region10: #{tpu_custom_call.1} parent=1 // pred_check
      _
    $region11: #{tpu_custom_call.1} parent=1 // pred_check_branch
      %28 = sbr.rel (0) target = $region13
    $region12: #{tpu_custom_call.1} parent=1 // pred_region
      _
    $region13: #{tpu_custom_call.1} parent=1 // pred_fallthru
      _
    // Predicated region
    $region14: #{tpu_custom_call.1} parent=1 // pred_check
      _
    $region15: #{tpu_custom_call.1} parent=1 // pred_check_branch
      %30 = sbr.rel (0) target = $region17
    $region16: #{tpu_custom_call.1} parent=1 // pred_region
      %31 = dma.done [#allocation3], 256
    $region17: #{tpu_custom_call.1} parent=1 // pred_fallthru
      _
    loop: start=0, step=1, limit=2
    $region18: #{tpu_custom_call.1} parent=1 // loop_pre_header
      _
    $region19: #{tpu_custom_call.1} parent=1 // loop_header
      %s33 = sphi 0, %s37
      %p34 = scmp.ge.s32.totalorder %s33, 2
      %v38 = vphi 0.0, %v44
      %v39 = vphi 0.0, %v46
    $region20: #{tpu_custom_call.1} parent=1 // loop_header_branch
      %36 = sbr.rel (%p34) target = $region24
    $region21: #{tpu_custom_call.1} parent=1 // loop_body
      %s40 = smul.u32 %s33, 2
      %s41 = smul.addr %s40, 4
      %s42 = scalar_lea.vmem [#allocation2], %s41
      %v43 = vld [vmem:[%s42] sm:$0xff]
      %v44 = vadd.f32 %v38, %v43
      %v45 = vmul.f32 %v43, %v43
      %v46 = vadd.f32 %v39, %v45
    $region22: #{tpu_custom_call.1} parent=1 // loop_footer
      %s37 = sadd.s32 1, %s33
    $region23: #{tpu_custom_call.1} parent=1 // loop_footer_branch
      %32 = sbr.rel target = $region19
    $region24: #{tpu_custom_call.1} parent=1 // loop_exit
      _
    %v48 = vcombine.high %v38, %v38
    %vm50 = vcmask 1043456
    %v51 = vsel %vm50, %v38, 0.0
    %v52 = vsel %vm50, %v48, 0.0
    %v53 = vadd.f32 %v51, %v52
    %54 = vadd.xlane.f32.xlu0 %v53
    %v55 = vpop.xlane.xlu0 %54
    %v57 = vcombine.high %v39, %v39
    %v59 = vsel %vm50, %v39, 0.0
    %v60 = vsel %vm50, %v57, 0.0
    %v61 = vadd.f32 %v59, %v60
    %62 = vadd.xlane.f32.xlu0 %v61
    %v63 = vpop.xlane.xlu0 %62
    %v64 = vmul.f32 %v55, 0.001953125
    %v65 = vmul.f32 %v63, 0.001953125
    %v66 = vmul.f32 %v64, %v64
    %v67 = vsub.f32 %v65, %v66
    %v68 = vmax.f32 %v67, 0.0
    %v69 = vadd.f32 %v68, 1e-05
    %v70 = vrsqrt.pop %v69
    %v71 = vld [vmem:[%s1] sm:$0xf]
    %v72 = vmul.f32 %v71, %v70
    %v73 = vld [vmem:[%s2] sm:$0xf]
    %v74 = vmul.f32 %v64, %v72
    %v75 = vsub.f32 %v73, %v74
    %vm76 = vcmask 3072
    %77 = vst.msk [vmem:[%s4] sm:$0xf] %vm76, %v64
    %78 = vst.msk [vmem:[%s5] sm:$0xf] %vm76, %v68
    loop: start=0, step=1, limit=2
    $region25: #{tpu_custom_call.1} parent=1 // loop_pre_header
      _
    $region26: #{tpu_custom_call.1} parent=1 // loop_header
      %s80 = sphi 0, %s84
      %p81 = scmp.ge.s32.totalorder %s80, 2
    $region27: #{tpu_custom_call.1} parent=1 // loop_header_branch
      %83 = sbr.rel (%p81) target = $region31
    $region28: #{tpu_custom_call.1} parent=1 // loop_body
      %s85 = smul.u32 %s80, 2
      %s86 = smul.addr %s85, 4
      %s87 = scalar_lea.vmem [#allocation2], %s86
      %v88 = vld [vmem:[%s87] sm:$0xff]
      %90 = vset.pattern.permute.xlu0 0
      %91 = vperm.xlu0 %90, %v72
      %v92 = vpop.permute.xlu0 %91
      %v94 = vunpack.c.l.s4 839922192
      %v95 = vunpack.c.0.s8 %v94
      %v96 = vlaneseq
      %v97 = vshrl.u32 %v96, 7
      %v98 = vsub.s32 %v95, %v97
      %v99 = vrot.slane %v92, %v98
      %v101 = vmul.f32 %v88, %v99
      %103 = vset.pattern.permute.xlu0 0
      %104 = vperm.xlu0 %103, %v75
      %v105 = vpop.permute.xlu0 %104
      %v107 = vunpack.c.l.s4 839922192
      %v108 = vunpack.c.0.s8 %v107
      %v109 = vlaneseq
      %v110 = vshrl.u32 %v109, 7
      %v111 = vsub.s32 %v108, %v110
      %v112 = vrot.slane %v105, %v111
      %v114 = vadd.f32 %v101, %v112
      %s115 = smul.addr %s85, 4
      %s116 = scalar_lea.vmem [#allocation5], %s115
      %117 = vst [vmem:[%s116] sm:$0xff] %v114
    $region29: #{tpu_custom_call.1} parent=1 // loop_footer
      %s84 = sadd.s32 1, %s80
    $region30: #{tpu_custom_call.1} parent=1 // loop_footer_branch
      %79 = sbr.rel target = $region26
    $region31: #{tpu_custom_call.1} parent=1 // loop_exit
      _
    // Predicated region
    $region32: #{tpu_custom_call.1} parent=1 // pred_check
      _
    $region33: #{tpu_custom_call.1} parent=1 // pred_check_branch
      %119 = sbr.rel (0) target = $region35
    $region34: #{tpu_custom_call.1} parent=1 // pred_region
      %s121 = ssub.s32 256, 256
      %122 = vsyncadd [#allocation4], %s121
      %s123 = sshll.u32 [#allocation5], 4
      %s124 = int_to_ptr.vmem [resolvable:$true] %s123
      %129 = dma.vmem_to_hbm [thread:$0]  %s124, 256, %s3, [#allocation4], 128, 128, 8
    $region35: #{tpu_custom_call.1} parent=1 // pred_fallthru
      _
    // Predicated region
    $region36: #{tpu_custom_call.1} parent=1 // pred_check
      _
    $region37: #{tpu_custom_call.1} parent=1 // pred_check_branch
      %131 = sbr.rel (0) target = $region39
    $region38: #{tpu_custom_call.1} parent=1 // pred_region
      _
    $region39: #{tpu_custom_call.1} parent=1 // pred_fallthru
      _
    // Predicated region
    $region40: #{tpu_custom_call.1} parent=1 // pred_check
      _
    $region41: #{tpu_custom_call.1} parent=1 // pred_check_branch
      %133 = sbr.rel (0) target = $region43
    $region42: #{tpu_custom_call.1} parent=1 // pred_region
      _
    $region43: #{tpu_custom_call.1} parent=1 // pred_fallthru
      _
    // Predicated region
    $region44: #{tpu_custom_call.1} parent=1 // pred_check
      _
    $region45: #{tpu_custom_call.1} parent=1 // pred_check_branch
      %135 = sbr.rel (0) target = $region47
    $region46: #{tpu_custom_call.1} parent=1 // pred_region
      %136 = dma.done [#allocation4], 256
    $region47: #{tpu_custom_call.1} parent=1 // pred_fallthru
      _
    // Predicated region
    $region48: #{tpu_custom_call.1} parent=1 // pred_check
      _
    $region49: #{tpu_custom_call.1} parent=1 // pred_check_branch
      %138 = sbr.rel (0) target = $region51
    $region50: #{tpu_custom_call.1} parent=1 // pred_region
      _
    $region51: #{tpu_custom_call.1} parent=1 // pred_fallthru
      _
    // Predicated region
    $region52: #{tpu_custom_call.1} parent=1 // pred_check
      _
    $region53: #{tpu_custom_call.1} parent=1 // pred_check_branch
      %140 = sbr.rel (0) target = $region55
    $region54: #{tpu_custom_call.1} parent=1 // pred_region
      _
    $region55: #{tpu_custom_call.1} parent=1 // pred_fallthru
      _
    %141 = vsyncpa [#allocation3], 1
    %142 = vsyncpa [#allocation4], 1

</llo_original>
